<compile_context>
chip_gen: v7x
topology: tpu7x:2x2x1
jax: 0.10.0
libtpu: 0.0.40
codegen_flags: <defaults>
</compile_context>

<pallas_src>
from typing import NamedTuple

import jax
import jax.numpy as jnp
from jax.experimental import pallas as pl
from jax.experimental.pallas import tpu as pltpu


def _round_up(x: int, m: int) -> int:
    return ((x + m - 1) // m) * m


def _vmem_limits():
    """(vmem_limit_bytes, tile_budget_bytes) sized per chip generation."""
    cap = None
    try:
        cap = getattr(pltpu.get_tpu_info(), "vmem_capacity_bytes", None)
    except Exception:
        cap = None
    if not cap:
        cap = 64 * 1024 * 1024                      # conservative: v7x per-TC VMEM
    if cap <= 64 * 1024 * 1024:                     # v7x-class: leave real headroom
        limit = 48 * 1024 * 1024
    else:                                           # v5e/v6e: 128 MiB physical
        limit = min(cap - 24 * 1024 * 1024, 100 * 1024 * 1024)
    budget = limit - 8 * 1024 * 1024                # slack for compiler scratch/sems
    return limit, budget


# ---------------------------------------------------------------------------
# Kernels
# ---------------------------------------------------------------------------
def _linear_kernel(x_ref, w_ref, b_ref, o_ref):
    # x_ref: (tm, F)  w_ref: (F, D_pad)  b_ref: (1, D_pad)  o_ref: (tm, D_pad)
    acc = jnp.dot(x_ref[...], w_ref[...], preferred_element_type=jnp.float32)
    o_ref[...] = (acc + b_ref[...]).astype(o_ref.dtype)


def _linear_kernel_ktiled(x_ref, w_ref, b_ref, o_ref, acc_ref):
    # Grid: (grid_m, grid_k).  acc_ref: (tm, D_pad) f32 scratch.
    k = pl.program_id(1)

    @pl.when(k == 0)
    def _init():
        acc_ref[...] = jnp.zeros_like(acc_ref)

    acc_ref[...] += jnp.dot(x_ref[...], w_ref[...],
                            preferred_element_type=jnp.float32)

    @pl.when(k == pl.num_programs(1) - 1)
    def _finalize():
        o_ref[...] = (acc_ref[...] + b_ref[...]).astype(o_ref.dtype)


# ---------------------------------------------------------------------------
# One-time parameter preparation (hoisted out of the per-forward path)
# ---------------------------------------------------------------------------
class InputProcessPlan(NamedTuple):
    weight_p: jax.Array      # (F_pad, D_pad) float32
    bias_p: jax.Array        # (1, D_pad) float32
    in_features: int         # original F
    out_features: int        # original D
    tk: int                  # 0 -> weight fully VMEM-resident; >0 -> K tile size
    vmem_limit: int
    vmem_budget: int


def prepare_input_process(weight, bias, *, force_tk: int = 0) -> InputProcessPlan:
    """Pad weight/bias once: D -> multiple of 128 (lane-dense stores); if the
    resident weight would not fit VMEM, pick a K tile and pad F to a multiple
    of it (zero columns/rows contribute nothing to the matmul)."""
    F, D = weight.shape
    weight = weight.astype(jnp.float32)
    bias = bias.astype(jnp.float32)
    D_pad = _round_up(D, 128)
    vmem_limit, budget = _vmem_limits()

    w_resident = _round_up(F, 8) * D_pad * 4        # single-buffered f32 weight
    if force_tk:
        tk = force_tk
    elif w_resident <= budget // 2:
        tk = 0                                      # weight stays fully resident
    else:
        # K-tiling fallback: double-buffered (tk, D_pad) weight slices.
        tk = ((budget // 3) // (2 * D_pad * 4)) // 128 * 128
        tk = max(128, tk)
        tk = min(tk, _round_up(F, 128))
    F_pad = F if tk == 0 else _round_up(F, tk)

    if (F_pad, D_pad) != (F, D):
        weight_p = jnp.zeros((F_pad, D_pad), jnp.float32).at[:F, :D].set(weight)
    else:
        weight_p = weight
    if D_pad != D:
        bias_p = jnp.zeros((1, D_pad), jnp.float32).at[0, :D].set(bias)
    else:
        bias_p = bias.reshape(1, D_pad)

    return InputProcessPlan(weight_p, bias_p, F, D, tk, vmem_limit, budget)


# ---------------------------------------------------------------------------
# Forward
# ---------------------------------------------------------------------------
def _choose_tm(M: int, budget: int, resident: int, per_row: int) -> int:
    tm = (budget - resident) // max(per_row, 1)
    tm = max(8, min(1024, tm))                      # roofline plateaus ~1024 rows
    tm = (tm // 8) * 8
    tm = min(tm, _round_up(M, 8))
    if M >= 1024:                                   # keep grid_m >= 2 for v7x 2-TC
        tm = min(tm, _round_up(pl.cdiv(M, 2), 8))
    return tm


def _resident_call(x2d, plan: InputProcessPlan, M: int, F: int, D_pad: int):
    # VMEM accounting (bytes): single-buffered weight+bias, double-buffered x/out.
    resident = _round_up(F, 8) * D_pad * 4 + 8 * D_pad * 4
    per_row = 2 * (_round_up(F, 128) + D_pad) * 4
    tm = _choose_tm(M, plan.vmem_budget, resident, per_row)
    grid_m = pl.cdiv(M, tm)

    return pl.pallas_call(
        _linear_kernel,
        out_shape=jax.ShapeDtypeStruct((M, D_pad), jnp.float32),
        grid_spec=pltpu.PrefetchScalarGridSpec(
            num_scalar_prefetch=0,
            grid=(grid_m,),
            in_specs=[
                pl.BlockSpec((tm, F), lambda i: (i, 0)),             # streamed rows
                pl.BlockSpec((F, D_pad), lambda i: (0, 0),
                             pipeline_mode=pl.Buffered(1)),          # resident weight
                pl.BlockSpec((1, D_pad), lambda i: (0, 0),
                             pipeline_mode=pl.Buffered(1)),          # resident bias
            ],
            out_specs=pl.BlockSpec((tm, D_pad), lambda i: (i, 0)),
        ),
        compiler_params=pltpu.CompilerParams(
            dimension_semantics=("parallel",),
            vmem_limit_bytes=plan.vmem_limit,
        ),
        cost_estimate=pl.CostEstimate(
            flops=2 * M * F * D_pad,
            transcendentals=0,
            bytes_accessed=4 * (M * F + F * D_pad + M * D_pad),
        ),
    )(x2d, plan.weight_p, plan.bias_p)


def _ktiled_call(x2d, plan: InputProcessPlan, M: int, F: int, D_pad: int):
    F_pad = plan.weight_p.shape[0]
    tk = plan.tk
    if F_pad != F:
        # Rare large-F path only: zero-pad K so no ragged block feeds the accumulator.
        x2d = jnp.pad(x2d, ((0, 0), (0, F_pad - F)))

    # VMEM: double-buffered weight slice + x/out tiles, 1-buffer bias, f32 acc scratch.
    resident = 2 * tk * D_pad * 4 + 8 * D_pad * 4
    per_row = (2 * tk + 2 * D_pad + D_pad) * 4
    tm = _choose_tm(M, plan.vmem_budget, resident, per_row)
    grid = (pl.cdiv(M, tm), F_pad // tk)

    return pl.pallas_call(
        _linear_kernel_ktiled,
        out_shape=jax.ShapeDtypeStruct((M, D_pad), jnp.float32),
        grid_spec=pltpu.PrefetchScalarGridSpec(
            num_scalar_prefetch=0,
            grid=grid,
            in_specs=[
                pl.BlockSpec((tm, tk), lambda i, k: (i, k)),
                pl.BlockSpec((tk, D_pad), lambda i, k: (k, 0)),
                pl.BlockSpec((1, D_pad), lambda i, k: (0, 0),
                             pipeline_mode=pl.Buffered(1)),
            ],
            out_specs=pl.BlockSpec((tm, D_pad), lambda i, k: (i, 0)),
            scratch_shapes=[pltpu.VMEM((tm, D_pad), jnp.float32)],
        ),
        compiler_params=pltpu.CompilerParams(
            dimension_semantics=("parallel", "arbitrary"),
            vmem_limit_bytes=plan.vmem_limit,
        ),
        cost_estimate=pl.CostEstimate(
            flops=2 * M * F_pad * D_pad,
            transcendentals=0,
            bytes_accessed=4 * (M * F_pad + F_pad * D_pad + M * D_pad),
        ),
    )(x2d, plan.weight_p, plan.bias_p)


def input_process_prepared(x, plan: InputProcessPlan):
    """x: (B, S, F) -> (B, S, D) using a previously prepared plan."""
    B, S, F = x.shape
    assert F == plan.in_features, "feature dim mismatch with prepared weights"
    M = B * S
    D = plan.out_features
    D_pad = plan.weight_p.shape[1]
    x2d = x.reshape(M, F).astype(jnp.float32)

    if plan.tk:
        out2d = _ktiled_call(x2d, plan, M, F, D_pad)
    else:
        out2d = _resident_call(x2d, plan, M, F, D_pad)

    return out2d[:, :D].reshape(B, S, D)


def input_process(x, weight, bias):
    """One-shot convenience wrapper (prep + apply). For repeated forwards, call
    prepare_input_process once and reuse the plan (avoids re-padding the weight)."""
    return input_process_prepared(x, prepare_input_process(weight, bias))


if __name__ == "__main__":
    # Small shapes implied by the forward: (batch, seq, features) -> (batch, seq, latent_dim)
    batch, seq, features, latent_dim = 2, 8, 32, 64

    key = jax.random.PRNGKey(0)
    kx, kw, kb, kx2, kw2, kb2 = jax.random.split(key, 6)

    x = jax.random.normal(kx, (batch, seq, features), dtype=jnp.float32)
    bound = 1.0 / (features ** 0.5)
    weight = jax.random.uniform(kw, (features, latent_dim), dtype=jnp.float32,
                                minval=-bound, maxval=bound)
    bias = jax.random.uniform(kb, (latent_dim,), dtype=jnp.float32,
                              minval=-bound, maxval=bound)

    # Prepared (hoisted) path: weight padding happens exactly once.
    plan = prepare_input_process(weight, bias)
    out = jax.block_until_ready(input_process_prepared(x, plan))
    ref = (x.reshape(-1, features) @ weight + bias).reshape(batch, seq, latent_dim)
    assert out.shape == (batch, seq, latent_dim)
    assert jnp.allclose(out, ref, atol=1e-4, rtol=1e-4)

    # Also exercise the K-tiled fallback (forced small tk) for correctness.
    features2 = 384
    x2 = jax.random.normal(kx2, (batch, seq, features2), dtype=jnp.float32)
    bound2 = 1.0 / (features2 ** 0.5)
    weight2 = jax.random.uniform(kw2, (features2, latent_dim), dtype=jnp.float32,
                                 minval=-bound2, maxval=bound2)
    bias2 = jax.random.uniform(kb2, (latent_dim,), dtype=jnp.float32,
                               minval=-bound2, maxval=bound2)
    plan2 = prepare_input_process(weight2, bias2, force_tk=128)
    out2 = jax.block_until_ready(input_process_prepared(x2, plan2))
    ref2 = (x2.reshape(-1, features2) @ weight2 + bias2).reshape(batch, seq, latent_dim)
    assert jnp.allclose(out2, ref2, atol=2e-3, rtol=2e-3)

    print("KERNEL_OK")
</pallas_src>

<mosaic_0001>
module attributes {stable_mosaic.version = 11 : i64} {
  func.func @_linear_kernel(%arg0: i32, %arg1: memref<16x32xf32, #tpu.memory_space<vmem>>, %arg2: memref<32x128xf32, #tpu.memory_space<vmem>>, %arg3: memref<1x128xf32, #tpu.memory_space<vmem>>, %arg4: memref<16x128xf32, #tpu.memory_space<vmem>>) attributes {dimension_semantics = [#tpu.dimension_semantics<parallel>], iteration_bounds = array<i64: 1>, scalar_prefetch = 0 : i64, scratch_operands = 0 : i64, tpu.core_type = #tpu.core_type<tc>, window_params = [{transform_indices = @transform_0, window_bounds = array<i64: 16, 32>}, {pipeline_mode = #tpu.pipeline_mode<synchronous>, transform_indices = @transform_1, window_bounds = array<i64: 32, 128>}, {pipeline_mode = #tpu.pipeline_mode<synchronous>, transform_indices = @transform_2, window_bounds = array<i64: 1, 128>}, {transform_indices = @transform_3, window_bounds = array<i64: 16, 128>}]} {
    %c0 = arith.constant 0 : index
    %c0_0 = arith.constant 0 : index
    %0 = vector.load %arg1[%c0, %c0_0] : memref<16x32xf32, #tpu.memory_space<vmem>>, vector<16x32xf32>
    %c0_1 = arith.constant 0 : index
    %c0_2 = arith.constant 0 : index
    %1 = vector.load %arg2[%c0_1, %c0_2] : memref<32x128xf32, #tpu.memory_space<vmem>>, vector<32x128xf32>
    %cst = arith.constant dense<0.000000e+00> : vector<16x128xf32>
    %2 = tpu.matmul %0, %1, %cst {dimension_numbers = #tpu.dot_dimension_numbers<[1], [0], [0], [1], [0, 0, 1, 1], [], []>} : vector<16x32xf32>, vector<32x128xf32>, vector<16x128xf32> -> vector<16x128xf32>
    %c0_3 = arith.constant 0 : index
    %c0_4 = arith.constant 0 : index
    %3 = vector.load %arg3[%c0_3, %c0_4] : memref<1x128xf32, #tpu.memory_space<vmem>>, vector<1x128xf32>
    %4 = vector.broadcast %3 : vector<1x128xf32> to vector<16x128xf32>
    %5 = arith.addf %2, %4 : vector<16x128xf32>
    %c0_5 = arith.constant 0 : index
    %c0_6 = arith.constant 0 : index
    %6 = vector.load %arg4[%c0_5, %c0_6] : memref<16x128xf32, #tpu.memory_space<vmem>>, vector<16x128xf32>
    tpu.vector_store %arg4[%c0_5, %c0_6], %5 {strides = array<i32>} : memref<16x128xf32, #tpu.memory_space<vmem>>, vector<16x128xf32>,
    return
  }
  func.func @transform_0(%arg0: i32) -> (i32, i32) {
    %c0_i32 = arith.constant 0 : i32
    %c0_i32_0 = arith.constant 0 : i32
    return %arg0, %c0_i32 : i32, i32
  }
  func.func @transform_1(%arg0: i32) -> (i32, i32) {
    %c0_i32 = arith.constant 0 : i32
    %c0_i32_0 = arith.constant 0 : i32
    %c0_i32_1 = arith.constant 0 : i32
    return %c0_i32, %c0_i32_0 : i32, i32
  }
  func.func @transform_2(%arg0: i32) -> (i32, i32) {
    %c0_i32 = arith.constant 0 : i32
    %c0_i32_0 = arith.constant 0 : i32
    %c0_i32_1 = arith.constant 0 : i32
    return %c0_i32, %c0_i32_0 : i32, i32
  }
  func.func @transform_3(%arg0: i32) -> (i32, i32) {
    %c0_i32 = arith.constant 0 : i32
    %c0_i32_0 = arith.constant 0 : i32
    return %arg0, %c0_i32 : i32, i32
  }
}

</mosaic_0001>

<llo_original>
// kernel: tpu_custom_call.1
$region0: #{tpu_custom_call.1}
  #allocation0 [shape = 'u32[]', space=smem, size = 0x4, offset = 0x4, fixed_abs, tag = 'smem constant byte address 0x4 - core index']
  #allocation1 [shape = 'u32[144,128]{1,0:T(1,128)}', space=vmem, size = 0x12000, scoped, tag = 'internal scratch']
  %s0 = inlined_call_operand.hbm [shape: f32[16,32], index: 0, kind: input, shape index: {}]
  %s1 = inlined_call_operand.hbm [shape: f32[32,128], index: 1, kind: input, shape index: {}]
  %s2 = inlined_call_operand.vmem [shape: f32[1,128], index: 2, kind: input, shape index: {}]
  %s3 = inlined_call_operand.hbm [shape: f32[16,128], index: 3, kind: output, shape index: {}]
  %s4 = sld [smem:[#allocation0]]
  $region30: #{tpu_custom_call.1} parent=0
    _
  %s6 = ssub.s32 1, %s4
  %s7 = scalar_select 0, %s6, %s4
  $region1: #{tpu_custom_call.1} parent=0
    #allocation2 [shape = 'u8[8192]{0}', space=vmem, size = 0x2000, scoped, tag = 'input window, operand 0, single buffered']
    #allocation3 [shape = 's32[1]{0}', space=sflag, size = 0x4, scoped, tag = 'scoped memory for tpu_custom_call.1']
    #allocation4 [shape = 's32[1]{0}', space=sflag, size = 0x4, scoped, tag = 'scoped memory for tpu_custom_call.1']
    #allocation5 [shape = 'u8[16384]{0}', space=vmem, size = 0x4000, scoped, tag = 'input window, operand 1, single buffered']
    #allocation6 [shape = 's32[1]{0}', space=sflag, size = 0x4, scoped, tag = 'scoped memory for tpu_custom_call.1']
    #allocation7 [shape = 'u8[8192]{0}', space=vmem, size = 0x2000, scoped, tag = 'output window, operand 0, single buffered']
    %8 = vsyncpa [#allocation3], 0
    %9 = vsyncpa [#allocation6], 0
    %10 = vsyncpa [#allocation4], 0
    // Predicated region
    $region2: #{tpu_custom_call.1} parent=1 // pred_check
      _
    $region3: #{tpu_custom_call.1} parent=1 // pred_check_branch
      %12 = sbr.rel (0) target = $region5
    $region4: #{tpu_custom_call.1} parent=1 // pred_region
      %s14 = ssub.s32 256, 256
      %15 = vsyncadd [#allocation3], %s14
      %s16 = sshll.u32 [#allocation2], 4
      %s17 = int_to_ptr.vmem [resolvable:$true] %s16
      %22 = dma.hbm_to_vmem [thread:$0]  %s0, 256, %s17, [#allocation3], 128, 128, 8
    $region5: #{tpu_custom_call.1} parent=1 // pred_fallthru
      _
    // Predicated region
    $region6: #{tpu_custom_call.1} parent=1 // pred_check
      _
    $region7: #{tpu_custom_call.1} parent=1 // pred_check_branch
      %24 = sbr.rel (0) target = $region9
    $region8: #{tpu_custom_call.1} parent=1 // pred_region
      %s26 = ssub.s32 512, 512
      %27 = vsyncadd [#allocation6], %s26
      %s28 = sshll.u32 [#allocation5], 4
      %s29 = int_to_ptr.vmem [resolvable:$true] %s28
      %34 = dma.hbm_to_vmem [thread:$0]  %s1, 512, %s29, [#allocation6], 128, 128, 8
    $region9: #{tpu_custom_call.1} parent=1 // pred_fallthru
      _
    // Predicated region
    $region10: #{tpu_custom_call.1} parent=1 // pred_check
      _
    $region11: #{tpu_custom_call.1} parent=1 // pred_check_branch
      %36 = sbr.rel (0) target = $region13
    $region12: #{tpu_custom_call.1} parent=1 // pred_region
      _
    $region13: #{tpu_custom_call.1} parent=1 // pred_fallthru
      _
    // Predicated region
    $region14: #{tpu_custom_call.1} parent=1 // pred_check
      _
    $region15: #{tpu_custom_call.1} parent=1 // pred_check_branch
      %38 = sbr.rel (0) target = $region17
    $region16: #{tpu_custom_call.1} parent=1 // pred_region
      %39 = dma.done [#allocation3], 256
    $region17: #{tpu_custom_call.1} parent=1 // pred_fallthru
      _
    // Predicated region
    $region18: #{tpu_custom_call.1} parent=1 // pred_check
      _
    $region19: #{tpu_custom_call.1} parent=1 // pred_check_branch
      %41 = sbr.rel (0) target = $region21
    $region20: #{tpu_custom_call.1} parent=1 // pred_region
      %42 = dma.done [#allocation6], 512
    $region21: #{tpu_custom_call.1} parent=1 // pred_fallthru
      _
    %v43 = vld [vmem:[#allocation2] sm:$0xff]
    %v44 = vld [vmem:[#allocation2 + $0x8] sm:$0xff]
    %v45 = vld [vmem:[#allocation5] sm:$0xff]
    %v46 = vld [vmem:[#allocation5 + $0x8] sm:$0xff]
    %v47 = vld [vmem:[#allocation5 + $0x10] sm:$0xff]
    %v48 = vld [vmem:[#allocation5 + $0x18] sm:$0xff]
    %v49 = vld [vmem:[%s2] sm:$0x1]
    %v51 = vlaneseq
    %v52 = vshrl.u32 %v51, 7
    %v53 = vsub.s32 0, %v52
    %v54 = vrot.slane %v49, %v53
    %vm56 = vcmask 261120
    %v58 = vsel %vm56, %v43, 0
    %v61 = vsel %vm56, %v44, 0
    %63 = vmatprep.subr.mxu0 0.0
    %64 = vmatpush1.msra.mxu0 %v45
    %65 = vmatprep.subr.mxu0 0.0
    %66 = vmatpush1.msra.mxu0 %v46
    %67 = vmatprep.subr.mxu0 0.0
    %68 = vmatpush1.msra.mxu0 %v47
    %69 = vmatprep.subr.mxu0 0.0
    %70 = vmatpush1.msra.mxu0 %v48
    %71 = vmatprep.subr.mxu0 0.0
    %72 = vmatpush1.msra.mxu0 0.0
    %73 = vmatprep.subr.mxu0 0.0
    %74 = vmatpush1.msra.mxu0 0.0
    %75 = vmatprep.subr.mxu0 0.0
    %76 = vmatpush1.msra.mxu0 0.0
    %77 = vmatprep.subr.mxu0 0.0
    %78 = vmatpush1.msra.mxu0 0.0
    %79 = vmatprep.subr.mxu0 0.0
    %80 = vmatpush1.msra.mxu0 0.0
    %81 = vmatprep.subr.mxu0 0.0
    %82 = vmatpush1.msra.mxu0 0.0
    %83 = vmatprep.subr.mxu0 0.0
    %84 = vmatpush1.msra.mxu0 0.0
    %85 = vmatprep.subr.mxu0 0.0
    %86 = vmatpush1.msra.mxu0 0.0
    %87 = vmatprep.subr.mxu0 0.0
    %88 = vmatpush1.msra.mxu0 0.0
    %89 = vmatprep.subr.mxu0 0.0
    %90 = vmatpush1.msra.mxu0 0.0
    %91 = vmatprep.subr.mxu0 0.0
    %92 = vmatpush1.msra.mxu0 0.0
    %93 = vmatprep.subr.mxu0 0.0
    %94 = vmatpush1.msra.mxu0 0.0
    %95 = vmatprep.subr.mxu0 0.0
    %96 = vmatpush1.msra.mxu0 0.0
    %97 = vmatprep.subr.mxu0 0.0
    %98 = vmatpush1.msra.mxu0 0.0
    %99 = vmatprep.subr.mxu0 0.0
    %100 = vmatpush1.msra.mxu0 0.0
    %101 = vmatprep.subr.mxu0 0.0
    %102 = vmatpush1.msra.mxu0 0.0
    %103 = vmatprep.subr.mxu0 0.0
    %104 = vmatpush1.msra.mxu0 0.0
    %105 = vmatprep.subr.mxu0 0.0
    %106 = vmatpush1.msra.mxu0 0.0
    %107 = vmatprep.subr.mxu0 0.0
    %108 = vmatpush1.msra.mxu0 0.0
    %109 = vmatprep.subr.mxu0 0.0
    %110 = vmatpush1.msra.mxu0 0.0
    %111 = vmatprep.subr.mxu0 0.0
    %112 = vmatpush1.msra.mxu0 0.0
    %113 = vmatprep.subr.mxu0 0.0
    %114 = vmatpush1.msra.mxu0 0.0
    %115 = vmatprep.subr.mxu0 0.0
    %116 = vmatpush1.msra.mxu0 0.0
    %117 = vmatprep.subr.mxu0 0.0
    %118 = vmatpush1.msra.mxu0 0.0
    %119 = vmatprep.subr.mxu0 0.0
    %120 = vmatpush1.msra.mxu0 0.0
    %121 = vmatprep.subr.mxu0 0.0
    %122 = vmatpush1.msra.mxu0 0.0
    %123 = vmatprep.subr.mxu0 0.0
    %124 = vmatpush1.msra.mxu0 0.0
    %125 = vmatprep.subr.mxu0 0.0
    %126 = vmatpush1.msra.mxu0 0.0
    %127 = vmatprep.mubr.f32.mxu0 0.0
    %128 = vmatmul.mubr.f32.gmra.mrb[0].mxu0 %v58
    %v129 = vpop.f32.mrb[0].mxu0
    %v130 = vadd.f32 %v54, %v129
    %v131 = vpop.f32.mrb[0].mxu0
    %132 = vmatprep.mubr.f32.mxu0 0.0
    %133 = vmatmul.mubr.f32.gmra.mrb[0].mxu0 %v61
    %v134 = vpop.f32.mrb[0].mxu0
    %v135 = vadd.f32 %v54, %v134
    %v136 = vpop.f32.mrb[0].mxu0
    %137 = vdwg.mxu0
    %138 = vst [vmem:[#allocation7] sm:$0xff] %v130
    %139 = vst [vmem:[#allocation7 + $0x8] sm:$0xff] %v135
    // Predicated region
    $region22: #{tpu_custom_call.1} parent=1 // pred_check
      _
    $region23: #{tpu_custom_call.1} parent=1 // pred_check_branch
      %141 = sbr.rel (0) target = $region25
    $region24: #{tpu_custom_call.1} parent=1 // pred_region
      %s143 = ssub.s32 256, 256
      %144 = vsyncadd [#allocation4], %s143
      %s145 = sshll.u32 [#allocation7], 4
      %s146 = int_to_ptr.vmem [resolvable:$true] %s145
      %151 = dma.vmem_to_hbm [thread:$0]  %s146, 256, %s3, [#allocation4], 128, 128, 8
    $region25: #{tpu_custom_call.1} parent=1 // pred_fallthru
      _
    // Predicated region
    $region26: #{tpu_custom_call.1} parent=1 // pred_check
      _
    $region27: #{tpu_custom_call.1} parent=1 // pred_check_branch
      %153 = sbr.rel (0) target = $region29
    $region28: #{tpu_custom_call.1} parent=1 // pred_region
      %154 = dma.done [#allocation4], 256
    $region29: #{tpu_custom_call.1} parent=1 // pred_fallthru
      _
    %155 = vsyncpa [#allocation3], 1
    %156 = vsyncpa [#allocation6], 1
    %157 = vsyncpa [#allocation4], 1

</llo_original>
